<compile_context>
chip_gen: v6e
topology: v6e:2x2x1
jax: 0.10.0
libtpu: 0.0.40
codegen_flags: <defaults>
</compile_context>

<pallas_src>
import math

import jax
import jax.numpy as jnp
from jax.experimental import pallas as pl
from jax.experimental.pallas import tpu as pltpu


def _round_up(n, m):
    return ((n + m - 1) // m) * m


def _cdiv(a, b):
    return -(-a // b)


_SQRT_2_OVER_PI = 0.7978845608028654          # sqrt(2/pi)
_GELU_C2 = _SQRT_2_OVER_PI * 0.044715         # folded inner-polynomial coefficient


def _gelu_tanh_f32(h):
    # 0.5*h*(1 + tanh(c*(h + 0.044715*h^3))) == 0.5*h*(1 + tanh(h*(c + c2*h*h)))
    return 0.5 * h * (1.0 + jnp.tanh(h * (_SQRT_2_OVER_PI + _GELU_C2 * (h * h))))


# --------------------------------------------------------------------------- #
# Kernels
# --------------------------------------------------------------------------- #
def _ffn_kernel_resident(x_ref, w1_ref, b1_ref, w2_ref, b2_ref, o_ref):
    """Weights-resident schedule: full d_ff per step, no accumulator scratch."""
    x = x_ref[...]
    h = jnp.dot(x, w1_ref[...], preferred_element_type=jnp.float32)
    h = h + b1_ref[...].astype(jnp.float32)
    g = _gelu_tanh_f32(h)
    # Dropout: identity in eval mode.
    # TODO(synk): training-mode dropout (stochastic mask) not implemented.
    out = jnp.dot(g.astype(x.dtype), w2_ref[...], preferred_element_type=jnp.float32)
    o_ref[...] = (out + b2_ref[...].astype(jnp.float32)).astype(o_ref.dtype)


def _ffn_kernel_blocked(x_ref, w1_ref, b1_ref, w2_ref, b2_ref, o_ref, acc_ref):
    """Fallback: d_ff blocked on an inner 'arbitrary' axis, f32 accumulator."""
    f = pl.program_id(1)

    @pl.when(f == 0)
    def _():
        # Seed accumulator with b2: removes a (tm, d_model) f32 add at finalize.
        acc_ref[...] = jnp.broadcast_to(
            b2_ref[...].astype(jnp.float32), acc_ref.shape)

    x = x_ref[...]
    h = jnp.dot(x, w1_ref[...], preferred_element_type=jnp.float32)
    h = h + b1_ref[...].astype(jnp.float32)
    g = _gelu_tanh_f32(h)
    # Dropout: identity in eval mode.
    acc_ref[...] += jnp.dot(g.astype(x.dtype), w2_ref[...],
                            preferred_element_type=jnp.float32)

    @pl.when(f == pl.num_programs(1) - 1)
    def _():
        o_ref[...] = acc_ref[...].astype(o_ref.dtype)


# --------------------------------------------------------------------------- #
# Wrapper
# --------------------------------------------------------------------------- #
def _physical_vmem_bytes():
    """Per-core VMEM capacity; conservative fallback if the query is unavailable."""
    try:
        phys = int(pltpu.get_tpu_info().vmem_capacity_bytes)
    except Exception:
        phys = 64 * 1024 * 1024  # conservative: v7x per-TensorCore VMEM
    # Sanity clamp in case the query reports an aggregate/unexpected value.
    return min(max(phys, 32 * 1024 * 1024), 128 * 1024 * 1024)


def _pick_row_tile(m, itemsize, target=512):
    """Row-tile size: sublane-aligned, low padding, >=2 tiles for v7x megacore."""
    gran = 16 if itemsize < 4 else 8          # bf16 packs 2 rows per sublane
    m_g = _round_up(m, gran)
    if m_g <= 256:
        return m_g                            # single small tile
    n_tiles = max(2, _cdiv(m, target))        # keep both v7x TensorCores busy
    tm = _round_up(_cdiv(m, n_tiles), gran)
    tm_128 = _round_up(tm, 128)               # MXU-friendlier if padding stays <~10%
    if n_tiles * tm_128 <= max(m_g, int(1.10 * m)):
        tm = tm_128
    return tm


def positionwise_ffn(x, w1, b1, w2, b2, *, tile_rows=512, compute_dtype=None):
    """x: [batch, seq, d_model]; w1: [d_model, d_ff]; b1: [d_ff];
    w2: [d_ff, d_model]; b2: [d_model].

    compute_dtype: optionally cast x/w1/w2 (e.g. to jnp.bfloat16) for the MXU.
    Accumulation is always f32.  This is an accuracy decision left to the caller.
    """
    batch, seq, d_model = x.shape
    d_ff = w1.shape[1]
    m = batch * seq
    out_dtype = x.dtype

    if compute_dtype is not None:
        x = x.astype(compute_dtype)
        w1 = w1.astype(compute_dtype)
        w2 = w2.astype(compute_dtype)

    x_itemsize = jnp.dtype(x.dtype).itemsize
    w_itemsize = jnp.dtype(w1.dtype).itemsize
    out_itemsize = jnp.dtype(out_dtype).itemsize

    tm = _pick_row_tile(m, x_itemsize, target=tile_rows)
    m_pad = _round_up(m, tm)
    num_row_tiles = m_pad // tm

    x2d = x.reshape(m, d_model)
    if m_pad != m:
        x2d = jnp.pad(x2d, ((0, m_pad - m), (0, 0)))
    b1_2d = b1.reshape(1, d_ff)
    b2_2d = b2.reshape(1, d_model)

    phys = _physical_vmem_bytes()
    vmem_cap = (phys * 3) // 4                # headroom for pipeline internals

    def resident_ws(tm_):
        io = 2 * tm_ * d_model * (x_itemsize + out_itemsize)       # dbl-buffered x/out tiles
        w = 2 * (2 * d_model * d_ff + d_ff + d_model) * w_itemsize  # weights+biases buffers
        tmp = 2 * tm_ * d_ff * 4                                    # h, g f32 temporaries
        return io + w + tmp

    def blocked_ws(tm_, bff):
        io = 2 * tm_ * d_model * (x_itemsize + out_itemsize)
        w = 3 * (2 * d_model * bff) * w_itemsize + 2 * (bff + d_model) * w_itemsize
        tmp = 2 * tm_ * bff * 4
        acc = tm_ * d_model * 4
        return io + w + tmp + acc

    weight_bytes = (w1.size + b1.size + w2.size + b2.size) * w_itemsize
    io_hbm = (m_pad * d_model) * (x_itemsize + out_itemsize)

    if resident_ws(tm) <= vmem_cap:
        # ----- weights-resident schedule (normal case) ----------------------
        ws = resident_ws(tm)
        cost = pl.CostEstimate(
            flops=4 * m_pad * d_model * d_ff,
            transcendentals=m_pad * d_ff,
            bytes_accessed=io_hbm + weight_bytes,     # weights DMA'd once
        )
        out2d = pl.pallas_call(
            _ffn_kernel_resident,
            out_shape=jax.ShapeDtypeStruct((m_pad, d_model), out_dtype),
            grid_spec=pltpu.PrefetchScalarGridSpec(
                num_scalar_prefetch=0,
                grid=(num_row_tiles,),
                in_specs=[
                    pl.BlockSpec((tm, d_model), lambda i: (i, 0)),
                    pl.BlockSpec((d_model, d_ff), lambda i: (0, 0)),  # constant -> resident
                    pl.BlockSpec((1, d_ff), lambda i: (0, 0)),
                    pl.BlockSpec((d_ff, d_model), lambda i: (0, 0)),  # constant -> resident
                    pl.BlockSpec((1, d_model), lambda i: (0, 0)),
                ],
                out_specs=pl.BlockSpec((tm, d_model), lambda i: (i, 0)),
            ),
            compiler_params=pltpu.CompilerParams(
                dimension_semantics=("parallel",),
                vmem_limit_bytes=min(vmem_cap,
                                     max(int(ws * 1.25), 32 * 1024 * 1024)),
            ),
            cost_estimate=cost,
        )(x2d, w1, b1_2d, w2, b2_2d)
    else:
        # ----- ff-blocked fallback (weights too large for VMEM residency) ---
        block_ff = d_ff
        for cand in (4096, 2048, 1024, 512, 256, 128):
            if d_ff % cand == 0 and blocked_ws(tm, cand) <= vmem_cap:
                block_ff = cand
                break
        ff_tiles = d_ff // block_ff
        ws = blocked_ws(tm, block_ff)
        cost = pl.CostEstimate(
            flops=4 * m_pad * d_model * d_ff,
            transcendentals=m_pad * d_ff,
            bytes_accessed=io_hbm + weight_bytes * num_row_tiles,  # re-streamed weights
        )
        out2d = pl.pallas_call(
            _ffn_kernel_blocked,
            out_shape=jax.ShapeDtypeStruct((m_pad, d_model), out_dtype),
            grid_spec=pltpu.PrefetchScalarGridSpec(
                num_scalar_prefetch=0,
                grid=(num_row_tiles, ff_tiles),  # rows (parallel) outer, d_ff (arbitrary) inner
                in_specs=[
                    pl.BlockSpec((tm, d_model), lambda i, f: (i, 0)),
                    pl.BlockSpec((d_model, block_ff), lambda i, f: (0, f),
                                 pipeline_mode=pl.Buffered(3)),
                    pl.BlockSpec((1, block_ff), lambda i, f: (0, f)),
                    pl.BlockSpec((block_ff, d_model), lambda i, f: (f, 0),
                                 pipeline_mode=pl.Buffered(3)),
                    pl.BlockSpec((1, d_model), lambda i, f: (0, 0)),
                ],
                out_specs=pl.BlockSpec((tm, d_model), lambda i, f: (i, 0)),
                scratch_shapes=[pltpu.VMEM((tm, d_model), jnp.float32)],
            ),
            compiler_params=pltpu.CompilerParams(
                dimension_semantics=("parallel", "arbitrary"),
                vmem_limit_bytes=min(vmem_cap,
                                     max(int(ws * 1.5), 32 * 1024 * 1024)),
            ),
            cost_estimate=cost,
        )(x2d, w1, b1_2d, w2, b2_2d)

    if m_pad != m:
        out2d = out2d[:m]
    return out2d.reshape(batch, seq, d_model)


# --------------------------------------------------------------------------- #
# Reference + test harness
# --------------------------------------------------------------------------- #
def _reference(x, w1, b1, w2, b2):
    h = jnp.einsum("bsd,df->bsf", x, w1) + b1
    c = math.sqrt(2.0 / math.pi)
    g = 0.5 * h * (1.0 + jnp.tanh(c * (h + 0.044715 * h ** 3)))
    return jnp.einsum("bsf,fd->bsd", g, w2) + b2


def _make_params(key, d_model, d_ff):
    k1, k2, k3, k4 = jax.random.split(key, 4)
    # nn.Linear init bounds; weights stored pre-transposed so y = x @ W + b.
    bound1 = 1.0 / math.sqrt(d_model)
    bound2 = 1.0 / math.sqrt(d_ff)
    w1 = jax.random.uniform(k1, (d_model, d_ff), jnp.float32, -bound1, bound1)
    b1 = jax.random.uniform(k2, (d_ff,), jnp.float32, -bound1, bound1)
    w2 = jax.random.uniform(k3, (d_ff, d_model), jnp.float32, -bound2, bound2)
    b2 = jax.random.uniform(k4, (d_model,), jnp.float32, -bound2, bound2)
    return w1, b1, w2, b2


if __name__ == "__main__":
    key = jax.random.PRNGKey(0)
    kx, kp, kx2 = jax.random.split(key, 3)

    # Small shapes consistent with the module.
    batch, seq, d_model, d_ff = 2, 8, 32, 64
    w1, b1, w2, b2 = _make_params(kp, d_model, d_ff)

    x = jax.random.normal(kx, (batch, seq, d_model), dtype=jnp.float32)
    out = jax.block_until_ready(positionwise_ffn(x, w1, b1, w2, b2))
    ref = _reference(x, w1, b1, w2, b2)
    assert out.shape == (batch, seq, d_model)
    assert jnp.allclose(out, ref, atol=1e-5, rtol=1e-5), "mismatch vs reference"

    # Non-divisible row count exercises the padded-tile path.
    x_odd = jax.random.normal(kx2, (batch, 5, d_model), dtype=jnp.float32)
    out_odd = jax.block_until_ready(positionwise_ffn(x_odd, w1, b1, w2, b2))
    ref_odd = _reference(x_odd, w1, b1, w2, b2)
    assert out_odd.shape == (batch, 5, d_model)
    assert jnp.allclose(out_odd, ref_odd, atol=1e-5, rtol=1e-5), "mismatch (odd rows)"

    # Optional bf16-operand MXU path (accuracy decision, loose tolerance).
    out_bf16 = jax.block_until_ready(
        positionwise_ffn(x, w1, b1, w2, b2, compute_dtype=jnp.bfloat16))
    assert out_bf16.shape == (batch, seq, d_model)
    assert jnp.allclose(out_bf16, ref, atol=1e-1, rtol=1e-1), "mismatch (bf16 path)"

    print("KERNEL_OK")
</pallas_src>

<mosaic_0001>
module attributes {stable_mosaic.version = 11 : i64} {
  func.func @_ffn_kernel_resident(%arg0: i32, %arg1: memref<16x32xf32, #tpu.memory_space<vmem>>, %arg2: memref<32x64xf32, #tpu.memory_space<vmem>>, %arg3: memref<1x64xf32, #tpu.memory_space<vmem>>, %arg4: memref<64x32xf32, #tpu.memory_space<vmem>>, %arg5: memref<1x32xf32, #tpu.memory_space<vmem>>, %arg6: memref<16x32xf32, #tpu.memory_space<vmem>>) attributes {dimension_semantics = [#tpu.dimension_semantics<parallel>], iteration_bounds = array<i64: 1>, scalar_prefetch = 0 : i64, scratch_operands = 0 : i64, tpu.core_type = #tpu.core_type<tc>, window_params = [{transform_indices = @transform_0, window_bounds = array<i64: 16, 32>}, {pipeline_mode = #tpu.pipeline_mode<synchronous>, transform_indices = @transform_1, window_bounds = array<i64: 32, 64>}, {pipeline_mode = #tpu.pipeline_mode<synchronous>, transform_indices = @transform_2, window_bounds = array<i64: 1, 64>}, {pipeline_mode = #tpu.pipeline_mode<synchronous>, transform_indices = @transform_3, window_bounds = array<i64: 64, 32>}, {pipeline_mode = #tpu.pipeline_mode<synchronous>, transform_indices = @transform_4, window_bounds = array<i64: 1, 32>}, {transform_indices = @transform_5, window_bounds = array<i64: 16, 32>}]} {
    %c0 = arith.constant 0 : index
    %c0_0 = arith.constant 0 : index
    %0 = vector.load %arg1[%c0, %c0_0] : memref<16x32xf32, #tpu.memory_space<vmem>>, vector<16x32xf32>
    %c0_1 = arith.constant 0 : index
    %c0_2 = arith.constant 0 : index
    %1 = vector.load %arg2[%c0_1, %c0_2] : memref<32x64xf32, #tpu.memory_space<vmem>>, vector<32x64xf32>
    %cst = arith.constant dense<0.000000e+00> : vector<16x64xf32>
    %2 = tpu.matmul %0, %1, %cst {dimension_numbers = #tpu.dot_dimension_numbers<[1], [0], [0], [1], [0, 0, 1, 1], [], []>} : vector<16x32xf32>, vector<32x64xf32>, vector<16x64xf32> -> vector<16x64xf32>
    %c0_3 = arith.constant 0 : index
    %c0_4 = arith.constant 0 : index
    %3 = vector.load %arg3[%c0_3, %c0_4] : memref<1x64xf32, #tpu.memory_space<vmem>>, vector<1x64xf32>
    %4 = vector.broadcast %3 : vector<1x64xf32> to vector<16x64xf32>
    %5 = arith.addf %2, %4 : vector<16x64xf32>
    %cst_5 = arith.constant 5.000000e-01 : f32
    %6 = vector.broadcast %cst_5 : f32 to vector<16x64xf32>
    %7 = arith.mulf %6, %5 : vector<16x64xf32>
    %8 = arith.mulf %5, %5 : vector<16x64xf32>
    %cst_6 = arith.constant 0.0356774069 : f32
    %9 = vector.broadcast %cst_6 : f32 to vector<16x64xf32>
    %10 = arith.mulf %9, %8 : vector<16x64xf32>
    %cst_7 = arith.constant 0.797884583 : f32
    %11 = vector.broadcast %cst_7 : f32 to vector<16x64xf32>
    %12 = arith.addf %11, %10 : vector<16x64xf32>
    %13 = arith.mulf %5, %12 : vector<16x64xf32>
    %14 = math.tanh %13 : vector<16x64xf32>
    %cst_8 = arith.constant 1.000000e+00 : f32
    %15 = vector.broadcast %cst_8 : f32 to vector<16x64xf32>
    %16 = arith.addf %15, %14 : vector<16x64xf32>
    %17 = arith.mulf %7, %16 : vector<16x64xf32>
    %c0_9 = arith.constant 0 : index
    %c0_10 = arith.constant 0 : index
    %18 = vector.load %arg4[%c0_9, %c0_10] : memref<64x32xf32, #tpu.memory_space<vmem>>, vector<64x32xf32>
    %cst_11 = arith.constant dense<0.000000e+00> : vector<16x32xf32>
    %19 = tpu.matmul %17, %18, %cst_11 {dimension_numbers = #tpu.dot_dimension_numbers<[1], [0], [0], [1], [0, 0, 1, 1], [], []>} : vector<16x64xf32>, vector<64x32xf32>, vector<16x32xf32> -> vector<16x32xf32>
    %c0_12 = arith.constant 0 : index
    %c0_13 = arith.constant 0 : index
    %20 = vector.load %arg5[%c0_12, %c0_13] : memref<1x32xf32, #tpu.memory_space<vmem>>, vector<1x32xf32>
    %21 = vector.broadcast %20 : vector<1x32xf32> to vector<16x32xf32>
    %22 = arith.addf %19, %21 : vector<16x32xf32>
    %c0_14 = arith.constant 0 : index
    %c0_15 = arith.constant 0 : index
    %23 = vector.load %arg6[%c0_14, %c0_15] : memref<16x32xf32, #tpu.memory_space<vmem>>, vector<16x32xf32>
    tpu.vector_store %arg6[%c0_14, %c0_15], %22 {strides = array<i32>} : memref<16x32xf32, #tpu.memory_space<vmem>>, vector<16x32xf32>,
    return
  }
  func.func @transform_0(%arg0: i32) -> (i32, i32) {
    %c0_i32 = arith.constant 0 : i32
    %c0_i32_0 = arith.constant 0 : i32
    return %arg0, %c0_i32 : i32, i32
  }
  func.func @transform_1(%arg0: i32) -> (i32, i32) {
    %c0_i32 = arith.constant 0 : i32
    %c0_i32_0 = arith.constant 0 : i32
    %c0_i32_1 = arith.constant 0 : i32
    return %c0_i32, %c0_i32_0 : i32, i32
  }
  func.func @transform_2(%arg0: i32) -> (i32, i32) {
    %c0_i32 = arith.constant 0 : i32
    %c0_i32_0 = arith.constant 0 : i32
    %c0_i32_1 = arith.constant 0 : i32
    return %c0_i32, %c0_i32_0 : i32, i32
  }
  func.func @transform_3(%arg0: i32) -> (i32, i32) {
    %c0_i32 = arith.constant 0 : i32
    %c0_i32_0 = arith.constant 0 : i32
    %c0_i32_1 = arith.constant 0 : i32
    return %c0_i32, %c0_i32_0 : i32, i32
  }
  func.func @transform_4(%arg0: i32) -> (i32, i32) {
    %c0_i32 = arith.constant 0 : i32
    %c0_i32_0 = arith.constant 0 : i32
    %c0_i32_1 = arith.constant 0 : i32
    return %c0_i32, %c0_i32_0 : i32, i32
  }
  func.func @transform_5(%arg0: i32) -> (i32, i32) {
    %c0_i32 = arith.constant 0 : i32
    %c0_i32_0 = arith.constant 0 : i32
    return %arg0, %c0_i32 : i32, i32
  }
}

</mosaic_0001>

<llo_original>
// kernel: tpu_custom_call.1
$region0: #{tpu_custom_call.1}
  #allocation0 [shape = 'u32[]', space=smem, size = 0x4, offset = 0x4, fixed_abs, tag = 'smem constant byte address 0x4 - core index']
  #allocation1 [shape = 'u32[144,128]{1,0:T(1,128)}', space=vmem, size = 0x12000, scoped, tag = 'internal scratch']
  %s0 = inlined_call_operand.vmem [shape: f32[16,32], index: 0, kind: input, shape index: {}]
  %s1 = inlined_call_operand.vmem [shape: f32[32,64], index: 1, kind: input, shape index: {}]
  %s2 = inlined_call_operand.vmem [shape: f32[1,64], index: 2, kind: input, shape index: {}]
  %s3 = inlined_call_operand.vmem [shape: f32[64,32], index: 3, kind: input, shape index: {}]
  %s4 = inlined_call_operand.vmem [shape: f32[1,32], index: 4, kind: input, shape index: {}]
  %s5 = inlined_call_operand.hbm [shape: f32[16,32], index: 5, kind: output, shape index: {}]
  %s6 = sld [smem:[#allocation0]]
  $region30: #{tpu_custom_call.1} parent=0
    _
  %s8 = ssub.s32 1, %s6
  %s9 = scalar_select 0, %s8, %s6
  $region1: #{tpu_custom_call.1} parent=0
    #allocation2 [shape = 'u8[8192]{0}', space=vmem, size = 0x2000, scoped, tag = 'output window, operand 0, single buffered']
    #allocation3 [shape = 's32[1]{0}', space=sflag, size = 0x4, scoped, tag = 'scoped memory for tpu_custom_call.1']
    %10 = vsyncpa [#allocation3], 0
    // Predicated region
    $region2: #{tpu_custom_call.1} parent=1 // pred_check
      _
    $region3: #{tpu_custom_call.1} parent=1 // pred_check_branch
      %12 = sbr.rel (0) target = $region5
    $region4: #{tpu_custom_call.1} parent=1 // pred_region
      _
    $region5: #{tpu_custom_call.1} parent=1 // pred_fallthru
      _
    // Predicated region
    $region6: #{tpu_custom_call.1} parent=1 // pred_check
      _
    $region7: #{tpu_custom_call.1} parent=1 // pred_check_branch
      %14 = sbr.rel (0) target = $region9
    $region8: #{tpu_custom_call.1} parent=1 // pred_region
      _
    $region9: #{tpu_custom_call.1} parent=1 // pred_fallthru
      _
    // Predicated region
    $region10: #{tpu_custom_call.1} parent=1 // pred_check
      _
    $region11: #{tpu_custom_call.1} parent=1 // pred_check_branch
      %16 = sbr.rel (0) target = $region13
    $region12: #{tpu_custom_call.1} parent=1 // pred_region
      _
    $region13: #{tpu_custom_call.1} parent=1 // pred_fallthru
      _
    // Predicated region
    $region14: #{tpu_custom_call.1} parent=1 // pred_check
      _
    $region15: #{tpu_custom_call.1} parent=1 // pred_check_branch
      %18 = sbr.rel (0) target = $region17
    $region16: #{tpu_custom_call.1} parent=1 // pred_region
      _
    $region17: #{tpu_custom_call.1} parent=1 // pred_fallthru
      _
    // Predicated region
    $region18: #{tpu_custom_call.1} parent=1 // pred_check
      _
    $region19: #{tpu_custom_call.1} parent=1 // pred_check_branch
      %20 = sbr.rel (0) target = $region21
    $region20: #{tpu_custom_call.1} parent=1 // pred_region
      _
    $region21: #{tpu_custom_call.1} parent=1 // pred_fallthru
      _
    %v21 = vld [vmem:[%s0] sm:$0xff]
    %v22 = vld [vmem:[%s0 + $0x8] sm:$0xff]
    %v23 = vld [vmem:[%s1] sm:$0xff]
    %v24 = vld [vmem:[%s1 + $0x8] sm:$0xff]
    %v25 = vld [vmem:[%s1 + $0x10] sm:$0xff]
    %v26 = vld [vmem:[%s1 + $0x18] sm:$0xff]
    %v27 = vld [vmem:[%s2] sm:$0x1]
    %v29 = vlaneseq
    %v30 = vshrl.u32 %v29, 7
    %v31 = vsub.s32 0, %v30
    %v32 = vrot.slane %v27, %v31
    %vm34 = vcmask 261120
    %v36 = vsel %vm34, %v21, 0
    %v39 = vsel %vm34, %v22, 0
    %41 = vmatprep.subr.mxu0 0.0
    %42 = vmatpush1.msra.mxu0 0.0
    %43 = vmatprep.subr.mxu0 0.0
    %44 = vmatpush1.msra.mxu0 0.0
    %45 = vmatprep.subr.mxu0 0.0
    %46 = vmatpush1.msra.mxu0 0.0
    %47 = vmatprep.subr.mxu0 0.0
    %48 = vmatpush1.msra.mxu0 0.0
    %49 = vmatprep.subr.mxu0 0.0
    %50 = vmatpush1.msra.mxu0 0.0
    %51 = vmatprep.subr.mxu0 0.0
    %52 = vmatpush1.msra.mxu0 0.0
    %53 = vmatprep.subr.mxu0 0.0
    %54 = vmatpush1.msra.mxu0 0.0
    %55 = vmatprep.subr.mxu0 0.0
    %56 = vmatpush1.msra.mxu0 0.0
    %57 = vmatprep.subr.mxu0 0.0
    %58 = vmatpush1.msra.mxu0 0.0
    %59 = vmatprep.subr.mxu0 0.0
    %60 = vmatpush1.msra.mxu0 0.0
    %61 = vmatprep.subr.mxu0 0.0
    %62 = vmatpush1.msra.mxu0 0.0
    %63 = vmatprep.subr.mxu0 0.0
    %64 = vmatpush1.msra.mxu0 0.0
    %65 = vmatprep.subr.mxu0 0.0
    %66 = vmatpush1.msra.mxu0 %v26
    %67 = vmatprep.subr.mxu0 0.0
    %68 = vmatpush1.msra.mxu0 %v25
    %69 = vmatprep.subr.mxu0 0.0
    %70 = vmatpush1.msra.mxu0 %v24
    %71 = vmatprep.subr.mxu0 0.0
    %72 = vmatpush1.msra.mxu0 %v23
    %73 = vmatprep.subr.mxu0 0.0
    %74 = vmatpush2.msra.mxu0 0.0
    %75 = vmatprep.subr.mxu0 0.0
    %76 = vmatpush2.msra.mxu0 0.0
    %77 = vmatprep.subr.mxu0 0.0
    %78 = vmatpush2.msra.mxu0 0.0
    %79 = vmatprep.subr.mxu0 0.0
    %80 = vmatpush2.msra.mxu0 0.0
    %81 = vmatprep.subr.mxu0 0.0
    %82 = vmatpush2.msra.mxu0 0.0
    %83 = vmatprep.subr.mxu0 0.0
    %84 = vmatpush2.msra.mxu0 0.0
    %85 = vmatprep.subr.mxu0 0.0
    %86 = vmatpush2.msra.mxu0 0.0
    %87 = vmatprep.subr.mxu0 0.0
    %88 = vmatpush2.msra.mxu0 0.0
    %89 = vmatprep.subr.mxu0 0.0
    %90 = vmatpush2.msra.mxu0 0.0
    %91 = vmatprep.subr.mxu0 0.0
    %92 = vmatpush2.msra.mxu0 0.0
    %93 = vmatprep.subr.mxu0 0.0
    %94 = vmatpush2.msra.mxu0 0.0
    %95 = vmatprep.subr.mxu0 0.0
    %96 = vmatpush2.msra.mxu0 0.0
    %97 = vmatprep.subr.mxu0 0.0
    %98 = vmatpush2.msra.mxu0 0.0
    %99 = vmatprep.subr.mxu0 0.0
    %100 = vmatpush2.msra.mxu0 0.0
    %101 = vmatprep.subr.mxu0 0.0
    %102 = vmatpush2.msra.mxu0 0.0
    %103 = vmatprep.subr.mxu0 0.0
    %104 = vmatpush2.msra.mxu0 0.0
    %105 = vmatprep.mubr.f32.mxu0 0.0
    %106 = vmatmul.mubr.f32.gmra.mxu0 %v36
    %v107 = vpop.f32.mrf.mxu0
    %v108 = vadd.f32 %v32, %v107
    %v109 = vpop.f32.mrf.mxu0
    %110 = vmatprep.mubr.f32.mxu0 0.0
    %111 = vmatmul.mubr.f32.gmra.mxu0 %v39
    %v112 = vpop.f32.mrf.mxu0
    %v113 = vadd.f32 %v32, %v112
    %v114 = vpop.f32.mrf.mxu0
    %115 = vdwg.mxu0
    %v116 = vmul.f32 %v108, 0.5
    %v117 = vmul.f32 %v113, 0.5
    %v118 = vmul.f32 %v108, %v108
    %v119 = vmul.f32 %v113, %v113
    %v120 = vmul.f32 %v118, 0.035677407
    %v121 = vmul.f32 %v119, 0.035677407
    %v122 = vadd.f32 %v120, 0.7978846
    %v123 = vadd.f32 %v121, 0.7978846
    %v124 = vmul.f32 %v108, %v122
    %v125 = vmul.f32 %v113, %v123
    %v126 = vtanh.pop %v124
    %v127 = vtanh.pop %v125
    %v128 = vadd.f32 %v126, 1.0
    %v129 = vadd.f32 %v127, 1.0
    %v130 = vmul.f32 %v116, %v128
    %v131 = vmul.f32 %v117, %v129
    %v132 = vld [vmem:[%s3] sm:$0xff]
    %v133 = vld [vmem:[%s3 + $0x8] sm:$0xff]
    %v134 = vld [vmem:[%s3 + $0x10] sm:$0xff]
    %v135 = vld [vmem:[%s3 + $0x18] sm:$0xff]
    %v136 = vld [vmem:[%s3 + $0x20] sm:$0xff]
    %v137 = vld [vmem:[%s3 + $0x28] sm:$0xff]
    %v138 = vld [vmem:[%s3 + $0x30] sm:$0xff]
    %v139 = vld [vmem:[%s3 + $0x38] sm:$0xff]
    %v140 = vld [vmem:[%s4] sm:$0x1]
    %v142 = vlaneseq
    %v143 = vshrl.u32 %v142, 7
    %v144 = vsub.s32 0, %v143
    %v145 = vrot.slane %v140, %v144
    %vm147 = vcmask 523264
    %v149 = vsel %vm147, %v130, 0
    %v152 = vsel %vm147, %v131, 0
    %154 = vmatprep.subr.mxu0 0.0
    %155 = vmatpush1.msra.mxu0 0.0
    %156 = vmatprep.subr.mxu0 0.0
    %157 = vmatpush1.msra.mxu0 0.0
    %158 = vmatprep.subr.mxu0 0.0
    %159 = vmatpush1.msra.mxu0 0.0
    %160 = vmatprep.subr.mxu0 0.0
    %161 = vmatpush1.msra.mxu0 0.0
    %162 = vmatprep.subr.mxu0 0.0
    %163 = vmatpush1.msra.mxu0 0.0
    %164 = vmatprep.subr.mxu0 0.0
    %165 = vmatpush1.msra.mxu0 0.0
    %166 = vmatprep.subr.mxu0 0.0
    %167 = vmatpush1.msra.mxu0 0.0
    %168 = vmatprep.subr.mxu0 0.0
    %169 = vmatpush1.msra.mxu0 0.0
    %170 = vmatprep.subr.mxu0 0.0
    %171 = vmatpush1.msra.mxu0 %v139
    %172 = vmatprep.subr.mxu0 0.0
    %173 = vmatpush1.msra.mxu0 %v138
    %174 = vmatprep.subr.mxu0 0.0
    %175 = vmatpush1.msra.mxu0 %v137
    %176 = vmatprep.subr.mxu0 0.0
    %177 = vmatpush1.msra.mxu0 %v136
    %178 = vmatprep.subr.mxu0 0.0
    %179 = vmatpush1.msra.mxu0 %v135
    %180 = vmatprep.subr.mxu0 0.0
    %181 = vmatpush1.msra.mxu0 %v134
    %182 = vmatprep.subr.mxu0 0.0
    %183 = vmatpush1.msra.mxu0 %v133
    %184 = vmatprep.subr.mxu0 0.0
    %185 = vmatpush1.msra.mxu0 %v132
    %186 = vmatprep.subr.mxu0 0.0
    %187 = vmatpush2.msra.mxu0 0.0
    %188 = vmatprep.subr.mxu0 0.0
    %189 = vmatpush2.msra.mxu0 0.0
    %190 = vmatprep.subr.mxu0 0.0
    %191 = vmatpush2.msra.mxu0 0.0
    %192 = vmatprep.subr.mxu0 0.0
    %193 = vmatpush2.msra.mxu0 0.0
    %194 = vmatprep.subr.mxu0 0.0
    %195 = vmatpush2.msra.mxu0 0.0
    %196 = vmatprep.subr.mxu0 0.0
    %197 = vmatpush2.msra.mxu0 0.0
    %198 = vmatprep.subr.mxu0 0.0
    %199 = vmatpush2.msra.mxu0 0.0
    %200 = vmatprep.subr.mxu0 0.0
    %201 = vmatpush2.msra.mxu0 0.0
    %202 = vmatprep.subr.mxu0 0.0
    %203 = vmatpush2.msra.mxu0 0.0
    %204 = vmatprep.subr.mxu0 0.0
    %205 = vmatpush2.msra.mxu0 0.0
    %206 = vmatprep.subr.mxu0 0.0
    %207 = vmatpush2.msra.mxu0 0.0
    %208 = vmatprep.subr.mxu0 0.0
    %209 = vmatpush2.msra.mxu0 0.0
    %210 = vmatprep.subr.mxu0 0.0
    %211 = vmatpush2.msra.mxu0 0.0
    %212 = vmatprep.subr.mxu0 0.0
    %213 = vmatpush2.msra.mxu0 0.0
    %214 = vmatprep.subr.mxu0 0.0
    %215 = vmatpush2.msra.mxu0 0.0
    %216 = vmatprep.subr.mxu0 0.0
    %217 = vmatpush2.msra.mxu0 0.0
    %218 = vmatprep.mubr.f32.mxu0 0.0
    %219 = vmatmul.mubr.f32.gmra.mxu0 %v149
    %v220 = vpop.f32.mrf.mxu0
    %v221 = vadd.f32 %v145, %v220
    %v222 = vpop.f32.mrf.mxu0
    %223 = vmatprep.mubr.f32.mxu0 0.0
    %224 = vmatmul.mubr.f32.gmra.mxu0 %v152
    %v225 = vpop.f32.mrf.mxu0
    %v226 = vadd.f32 %v145, %v225
    %v227 = vpop.f32.mrf.mxu0
    %228 = vdwg.mxu0
    %229 = vst.msk [vmem:[#allocation2] sm:$0xff] %vm34, %v221
    %230 = vst.msk [vmem:[#allocation2 + $0x8] sm:$0xff] %vm34, %v226
    // Predicated region
    $region22: #{tpu_custom_call.1} parent=1 // pred_check
      _
    $region23: #{tpu_custom_call.1} parent=1 // pred_check_branch
      %232 = sbr.rel (0) target = $region25
    $region24: #{tpu_custom_call.1} parent=1 // pred_region
      %s234 = ssub.s32 256, 256
      %235 = vsyncadd [#allocation3], %s234
      %s236 = sshll.u32 [#allocation2], 4
      %s237 = int_to_ptr.vmem [resolvable:$true] %s236
      %242 = dma.vmem_to_hbm [thread:$0]  %s237, 256, %s5, [#allocation3], 128, 128, 8
    $region25: #{tpu_custom_call.1} parent=1 // pred_fallthru
      _
    // Predicated region
    $region26: #{tpu_custom_call.1} parent=1 // pred_check
      _
    $region27: #{tpu_custom_call.1} parent=1 // pred_check_branch
      %244 = sbr.rel (0) target = $region29
    $region28: #{tpu_custom_call.1} parent=1 // pred_region
      %245 = dma.done [#allocation3], 256
    $region29: #{tpu_custom_call.1} parent=1 // pred_fallthru
      _
    %246 = vsyncpa [#allocation3], 1

</llo_original>
